<compile_context>
chip_gen: v7x
topology: tpu7x:2x2x1
jax: 0.10.0
libtpu: 0.0.40
codegen_flags: <defaults>
</compile_context>

<pallas_src>
import math

import jax
import jax.numpy as jnp
import numpy as np
from jax.experimental import pallas as pl
from jax.experimental.pallas import tpu as pltpu

EPS = 1e-12
LOG_EPS = math.log(EPS)


def _censored_ce_tile_kernel(x_ref, y_ref, obs_ref, out_ref):
    x = x_ref[...].astype(jnp.float32)       # (TN, C) logits
    y = y_ref[...]                           # (TN, 1) int32 labels
    obs = obs_ref[...].astype(jnp.float32)   # (TN, 1) observation flags
    tn, c = x.shape

    col = jax.lax.broadcasted_iota(jnp.int32, (tn, c), 1)

    # Log-space softmax statistics (no (TN,C) divide/clamp/multiply).
    m = jnp.max(x, axis=1, keepdims=True)
    e = jnp.exp(x - m)
    z = jnp.sum(e, axis=1, keepdims=True)    # z >= 1
    log_z = jnp.log(z)

    # log(clamp(p[i, y[i]], EPS)) = max(x_y - m - log Z, log EPS)
    x_label = jnp.sum(jnp.where(col == y, x, 0.0), axis=1, keepdims=True)
    logp_label = jnp.maximum(x_label - m - log_z, LOG_EPS)

    # log(clamp(sum_{j>y} p[i, j], EPS)) = max(log(sum_{j>y} e) - log Z, log EPS)
    e_tail = jnp.sum(jnp.where(col > y, e, 0.0), axis=1, keepdims=True)
    logp_tail = jnp.maximum(jnp.log(jnp.maximum(e_tail, 1e-37)) - log_z, LOG_EPS)

    use_tail = jnp.logical_and(obs <= 0.5, y != c - 1)
    out_ref[...] = jnp.where(use_tail, logp_tail, logp_label)


def _round_up(v, m):
    return ((v + m - 1) // m) * m


def censored_cross_entropy_loss(x, y, obs, *, block_rows=None):
    """x: (N, C) float logits, y: (N,) int labels, obs: (N,) float flags. Returns scalar f32."""
    n, c = x.shape
    y2 = y.astype(jnp.int32).reshape(n, 1)
    obs2 = obs.astype(jnp.float32).reshape(n, 1)

    if block_rows is None:
        # Keep a double-buffered x tile well under the ~32 MiB scoped VMEM
        # (works on v5e/v6e/v7x); >=512 rows already sits near the HBM roofline.
        bytes_per_row = c * x.dtype.itemsize
        cand = max(8, min(1024, (8 * 1024 * 1024) // max(1, bytes_per_row)))
        cand = (cand // 8) * 8
        block_rows = min(cand, _round_up(n, 8))
    if block_rows >= n:
        block_rows = n  # single tile; block equals full array dim (always legal)
    block_rows = int(block_rows)

    grid = (pl.cdiv(n, block_rows),)

    per_row = pl.pallas_call(
        _censored_ce_tile_kernel,
        out_shape=jax.ShapeDtypeStruct((n, 1), jnp.float32),
        grid=grid,
        in_specs=[
            pl.BlockSpec((block_rows, c), lambda i: (i, 0)),
            pl.BlockSpec((block_rows, 1), lambda i: (i, 0)),
            pl.BlockSpec((block_rows, 1), lambda i: (i, 0)),
        ],
        out_specs=pl.BlockSpec((block_rows, 1), lambda i: (i, 0)),
        compiler_params=pltpu.CompilerParams(
            dimension_semantics=("parallel",),   # lets v7x shard tiles over both TCs
            vmem_limit_bytes=32 * 1024 * 1024,
        ),
        cost_estimate=pl.CostEstimate(
            flops=6 * n * c,
            transcendentals=n * c,
            bytes_accessed=n * c * x.dtype.itemsize + n * 12,
        ),
    )(x, y2, obs2)

    # Final reduction / normalization by the true global N in the wrapper.
    return -jnp.sum(per_row[:, 0]) / jnp.float32(n)


def _reference(x, y, obs):
    # Pure-JAX reference mirroring the PyTorch per-sample loop (vectorized).
    p = jnp.maximum(jax.nn.softmax(x.astype(jnp.float32), axis=1), EPS)
    n, c = x.shape
    col = jnp.arange(c, dtype=jnp.int32)[None, :]
    y2 = y.astype(jnp.int32)[:, None]
    p_label = jnp.sum(jnp.where(col == y2, p, 0.0), axis=1)
    p_tail = jnp.sum(jnp.where(col > y2, p, 0.0), axis=1)
    use_tail = jnp.logical_and(obs <= 0.5, y.astype(jnp.int32) != c - 1)
    val = jnp.where(use_tail,
                    jnp.log(jnp.maximum(p_tail, EPS)),
                    jnp.log(jnp.maximum(p_label, EPS)))
    return -jnp.sum(val) / n


if __name__ == "__main__":
    key = jax.random.PRNGKey(0)
    k1, k2, k3, k4, k5, k6 = jax.random.split(key, 6)

    # Small test (matches the module's expected shapes).
    N, C = 8, 16
    x = jax.random.normal(k1, (N, C), dtype=jnp.float32)
    y = jax.random.randint(k2, (N,), 0, C, dtype=jnp.int32)
    obs = (jax.random.uniform(k3, (N,)) > 0.5).astype(jnp.float32)

    loss = jax.block_until_ready(censored_cross_entropy_loss(x, y, obs))
    ref = _reference(x, y, obs)
    assert np.allclose(np.asarray(loss), np.asarray(ref), rtol=1e-5, atol=1e-6), (loss, ref)

    # Larger, ragged-tiled test: grid of 4 row tiles, last tile partial.
    N2, C2 = 200, 128
    x2 = jax.random.normal(k4, (N2, C2), dtype=jnp.float32)
    y2 = jax.random.randint(k5, (N2,), 0, C2, dtype=jnp.int32)
    obs2 = (jax.random.uniform(k6, (N2,)) > 0.5).astype(jnp.float32)

    loss2 = jax.block_until_ready(
        censored_cross_entropy_loss(x2, y2, obs2, block_rows=64))
    ref2 = _reference(x2, y2, obs2)
    assert np.allclose(np.asarray(loss2), np.asarray(ref2), rtol=1e-5, atol=1e-6), (loss2, ref2)

    print("KERNEL_OK")
</pallas_src>

<mosaic_0001>
module attributes {stable_mosaic.version = 11 : i64} {
  func.func @_censored_ce_tile_kernel(%arg0: i32, %arg1: memref<8x16xf32, #tpu.memory_space<vmem>>, %arg2: memref<8x1xi32, #tpu.memory_space<vmem>>, %arg3: memref<8x1xf32, #tpu.memory_space<vmem>>, %arg4: memref<8x1xf32, #tpu.memory_space<vmem>>) attributes {dimension_semantics = [#tpu.dimension_semantics<parallel>], iteration_bounds = array<i64: 1>, scalar_prefetch = 0 : i64, scratch_operands = 0 : i64, tpu.core_type = #tpu.core_type<tc>, window_params = [{transform_indices = @transform_0, window_bounds = array<i64: 8, 16>}, {transform_indices = @transform_1, window_bounds = array<i64: 8, 1>}, {transform_indices = @transform_2, window_bounds = array<i64: 8, 1>}, {transform_indices = @transform_3, window_bounds = array<i64: 8, 1>}]} {
    %c0 = arith.constant 0 : index
    %c0_0 = arith.constant 0 : index
    %0 = vector.load %arg1[%c0, %c0_0] : memref<8x16xf32, #tpu.memory_space<vmem>>, vector<8x16xf32>
    %c0_1 = arith.constant 0 : index
    %c0_2 = arith.constant 0 : index
    %1 = vector.load %arg2[%c0_1, %c0_2] : memref<8x1xi32, #tpu.memory_space<vmem>>, vector<8x1xi32>
    %c0_3 = arith.constant 0 : index
    %c0_4 = arith.constant 0 : index
    %2 = vector.load %arg3[%c0_3, %c0_4] : memref<8x1xf32, #tpu.memory_space<vmem>>, vector<8x1xf32>
    %3 = tpu.iota {dimensions = array<i32: 1>} : vector<8x16xi32>
    %cst = arith.constant dense<0xFF800000> : vector<8xf32>
    %4 = vector.multi_reduction <maximumf>, %0, %cst [1] : vector<8x16xf32> to vector<8xf32>
    %5 = vector.shape_cast %4 : vector<8xf32> to vector<8x1xf32>
    %6 = vector.broadcast %5 : vector<8x1xf32> to vector<8x16xf32>
    %7 = arith.subf %0, %6 : vector<8x16xf32>
    %8 = math.exp %7 : vector<8x16xf32>
    %cst_5 = arith.constant dense<0.000000e+00> : vector<8xf32>
    %9 = vector.multi_reduction <add>, %8, %cst_5 [1] : vector<8x16xf32> to vector<8xf32>
    %10 = vector.shape_cast %9 : vector<8xf32> to vector<8x1xf32>
    %11 = math.log %10 : vector<8x1xf32>
    %12 = vector.broadcast %1 : vector<8x1xi32> to vector<8x16xi32>
    %13 = arith.cmpi eq, %3, %12 : vector<8x16xi32>
    %cst_6 = arith.constant 0.000000e+00 : f32
    %14 = vector.broadcast %cst_6 : f32 to vector<8x16xf32>
    %15 = arith.select %13, %0, %14 : vector<8x16xi1>, vector<8x16xf32>
    %cst_7 = arith.constant dense<0.000000e+00> : vector<8xf32>
    %16 = vector.multi_reduction <add>, %15, %cst_7 [1] : vector<8x16xf32> to vector<8xf32>
    %17 = vector.shape_cast %16 : vector<8xf32> to vector<8x1xf32>
    %18 = arith.subf %17, %5 : vector<8x1xf32>
    %19 = arith.subf %18, %11 : vector<8x1xf32>
    %cst_8 = arith.constant -27.6310215 : f32
    %20 = vector.broadcast %cst_8 : f32 to vector<8x1xf32>
    %21 = arith.maximumf %19, %20 : vector<8x1xf32>
    %22 = vector.broadcast %1 : vector<8x1xi32> to vector<8x16xi32>
    %23 = arith.cmpi sgt, %3, %22 : vector<8x16xi32>
    %cst_9 = arith.constant 0.000000e+00 : f32
    %24 = vector.broadcast %cst_9 : f32 to vector<8x16xf32>
    %25 = arith.select %23, %8, %24 : vector<8x16xi1>, vector<8x16xf32>
    %cst_10 = arith.constant dense<0.000000e+00> : vector<8xf32>
    %26 = vector.multi_reduction <add>, %25, %cst_10 [1] : vector<8x16xf32> to vector<8xf32>
    %27 = vector.shape_cast %26 : vector<8xf32> to vector<8x1xf32>
    %cst_11 = arith.constant 9.99999991E-38 : f32
    %28 = vector.broadcast %cst_11 : f32 to vector<8x1xf32>
    %29 = arith.maximumf %27, %28 : vector<8x1xf32>
    %30 = math.log %29 : vector<8x1xf32>
    %31 = arith.subf %30, %11 : vector<8x1xf32>
    %cst_12 = arith.constant -27.6310215 : f32
    %32 = vector.broadcast %cst_12 : f32 to vector<8x1xf32>
    %33 = arith.maximumf %31, %32 : vector<8x1xf32>
    %cst_13 = arith.constant 5.000000e-01 : f32
    %34 = vector.broadcast %cst_13 : f32 to vector<8x1xf32>
    %35 = arith.cmpf ole, %2, %34 : vector<8x1xf32>
    %c15_i32 = arith.constant 15 : i32
    %36 = vector.broadcast %c15_i32 : i32 to vector<8x1xi32>
    %37 = arith.cmpi ne, %1, %36 : vector<8x1xi32>
    %38 = arith.andi %35, %37 : vector<8x1xi1>
    %39 = arith.select %38, %33, %21 : vector<8x1xi1>, vector<8x1xf32>
    %c0_14 = arith.constant 0 : index
    %c0_15 = arith.constant 0 : index
    %40 = vector.load %arg4[%c0_14, %c0_15] : memref<8x1xf32, #tpu.memory_space<vmem>>, vector<8x1xf32>
    tpu.vector_store %arg4[%c0_14, %c0_15], %39 {strides = array<i32>} : memref<8x1xf32, #tpu.memory_space<vmem>>, vector<8x1xf32>,
    return
  }
  func.func @transform_0(%arg0: i32) -> (i32, i32) {
    %c0_i32 = arith.constant 0 : i32
    %c0_i32_0 = arith.constant 0 : i32
    return %arg0, %c0_i32 : i32, i32
  }
  func.func @transform_1(%arg0: i32) -> (i32, i32) {
    %c0_i32 = arith.constant 0 : i32
    %c0_i32_0 = arith.constant 0 : i32
    return %arg0, %c0_i32 : i32, i32
  }
  func.func @transform_2(%arg0: i32) -> (i32, i32) {
    %c0_i32 = arith.constant 0 : i32
    %c0_i32_0 = arith.constant 0 : i32
    return %arg0, %c0_i32 : i32, i32
  }
  func.func @transform_3(%arg0: i32) -> (i32, i32) {
    %c0_i32 = arith.constant 0 : i32
    %c0_i32_0 = arith.constant 0 : i32
    return %arg0, %c0_i32 : i32, i32
  }
}

</mosaic_0001>

<llo_original>
// kernel: tpu_custom_call.1
$region0: #{tpu_custom_call.1}
  #allocation0 [shape = 'u32[]', space=smem, size = 0x4, offset = 0x4, fixed_abs, tag = 'smem constant byte address 0x4 - core index']
  #allocation1 [shape = 'u32[144,128]{1,0:T(1,128)}', space=vmem, size = 0x12000, scoped, tag = 'internal scratch']
  %s0 = inlined_call_operand.vmem [shape: f32[8,16], index: 0, kind: input, shape index: {}]
  %s1 = inlined_call_operand.vmem [shape: s32[8,1], index: 1, kind: input, shape index: {}]
  %s2 = inlined_call_operand.vmem [shape: f32[8,1], index: 2, kind: input, shape index: {}]
  %s3 = inlined_call_operand.vmem [shape: f32[8,1], index: 3, kind: output, shape index: {}]
  %s4 = sld [smem:[#allocation0]]
  $region22: #{tpu_custom_call.1} parent=0
    _
  %s6 = ssub.s32 1, %s4
  %s7 = scalar_select 0, %s6, %s4
  // Predicated region
  $region2: #{tpu_custom_call.1} parent=0 // pred_check
    _
  $region3: #{tpu_custom_call.1} parent=0 // pred_check_branch
    %9 = sbr.rel (0) target = $region5
  $region4: #{tpu_custom_call.1} parent=0 // pred_region
    _
  $region5: #{tpu_custom_call.1} parent=0 // pred_fallthru
    _
  // Predicated region
  $region6: #{tpu_custom_call.1} parent=0 // pred_check
    _
  $region7: #{tpu_custom_call.1} parent=0 // pred_check_branch
    %11 = sbr.rel (0) target = $region9
  $region8: #{tpu_custom_call.1} parent=0 // pred_region
    _
  $region9: #{tpu_custom_call.1} parent=0 // pred_fallthru
    _
  // Predicated region
  $region10: #{tpu_custom_call.1} parent=0 // pred_check
    _
  $region11: #{tpu_custom_call.1} parent=0 // pred_check_branch
    %13 = sbr.rel (0) target = $region13
  $region12: #{tpu_custom_call.1} parent=0 // pred_region
    _
  $region13: #{tpu_custom_call.1} parent=0 // pred_fallthru
    _
  %v14 = vld [vmem:[%s0] sm:$0xff]
  %v15 = vld [vmem:[%s1] sm:$0xff]
  %v16 = vld [vmem:[%s2] sm:$0xff]
  %v17 = vlaneseq
  %v18 = vand.u32 %v17, 127
  %vm19 = vcmask 130048
  %v20 = vsel %vm19, %v14, -inf
  %21 = vmax.xlane.f32.xlu0 %v20
  %v22 = vpop.xlane.xlu0 %21
  %v23 = vsub.f32 %v14, %v22
  %v24 = vmul.f32 %v23, 1.442695
  %v25 = vpow.pop %v24
  %v26 = vsel %vm19, %v25, 0.0
  %27 = vadd.xlane.f32.xlu0 %v26
  %v28 = vpop.xlane.xlu0 %27
  %v29 = vlog2.pop %v28
  %v30 = vmul.f32 %v29, 0.6931472
  %31 = vset.pattern.permute.xlu0 0
  %32 = vperm.xlu0 %31, %v15
  %v33 = vpop.permute.xlu0 %32
  %vm34 = vcmp.eq.s32.totalorder %v18, %v33
  %v35 = vsel %vm34, %v14, 0.0
  %v36 = vsel %vm19, %v35, 0.0
  %37 = vadd.xlane.f32.xlu0 %v36
  %v38 = vpop.xlane.xlu0 %37
  %v39 = vsub.f32 %v38, %v22
  %v40 = vsub.f32 %v39, %v30
  %v41 = vmax.f32 %v40, -27.631021
  %vm42 = vcmp.gt.s32.totalorder %v18, %v33
  %v43 = vsel %vm42, %v25, 0.0
  %v44 = vsel %vm19, %v43, 0.0
  %45 = vadd.xlane.f32.xlu0 %v44
  %v46 = vpop.xlane.xlu0 %45
  %v47 = vmax.f32 %v46, 1e-37
  %v48 = vlog2.pop %v47
  %v49 = vmul.f32 %v48, 0.6931472
  %v50 = vsub.f32 %v49, %v30
  %v51 = vmax.f32 %v50, -27.631021
  %vm52 = vcmp.le.f32.partialorder %v16, 0.5
  %vm53 = vcmp.ne.s32.totalorder %v15, 15
  %vm54 = vmand %vm52, %vm53
  %v55 = vsel %vm54, %v51, %v41
  %vm56 = vcmask 7168
  %57 = vst.msk [vmem:[%s3] sm:$0xff] %vm56, %v55
  // Predicated region
  $region14: #{tpu_custom_call.1} parent=0 // pred_check
    _
  $region15: #{tpu_custom_call.1} parent=0 // pred_check_branch
    %59 = sbr.rel (0) target = $region17
  $region16: #{tpu_custom_call.1} parent=0 // pred_region
    _
  $region17: #{tpu_custom_call.1} parent=0 // pred_fallthru
    _
  // Predicated region
  $region18: #{tpu_custom_call.1} parent=0 // pred_check
    _
  $region19: #{tpu_custom_call.1} parent=0 // pred_check_branch
    %61 = sbr.rel (0) target = $region21
  $region20: #{tpu_custom_call.1} parent=0 // pred_region
    _
  $region21: #{tpu_custom_call.1} parent=0 // pred_fallthru
    _

</llo_original>
